<compile_context>
chip_gen: v7x
topology: tpu7x:2x2x1
jax: 0.10.0
libtpu: 0.0.40
codegen_flags: <defaults>
</compile_context>

<pallas_src>
import functools

import jax
import jax.numpy as jnp
from jax import lax
from jax.experimental import pallas as pl
from jax.experimental.pallas import tpu as pltpu


def _corr_kernel(xr_ref, xc_ref, corr_ref, acc_ref, *, scale):
    # xr_ref: (TM, TK) row tile of features for the current batch element
    # xc_ref: (TN, TK) column tile of features (same tensor, indexed by j)
    # corr_ref: (TM, TN) output tile; acc_ref: (TM, TN) f32 accumulator
    k = pl.program_id(3)

    @pl.when(k == 0)
    def _():
        acc_ref[...] = jnp.zeros_like(acc_ref)

    # Pre-scale only the row operand (scaling both would square the factor).
    xr = xr_ref[...] * jnp.asarray(scale, dtype=xr_ref.dtype)
    xc = xc_ref[...]

    # Contract over the last dim of both operands -> MXU matmul, no transpose.
    acc_ref[...] += lax.dot_general(
        xr, xc,
        dimension_numbers=(((1,), (1,)), ((), ())),
        preferred_element_type=jnp.float32,
    )

    @pl.when(k == pl.num_programs(3) - 1)
    def _():
        corr_ref[...] = acc_ref[...].astype(corr_ref.dtype)


def _mxu_tile_preference():
    """256 for v6e/v7x-class MXUs, 128 for v5e; fall back to 256."""
    try:
        kind = jax.devices()[0].device_kind.lower()
    except Exception:  # pragma: no cover - defensive
        return 256
    if "v5 lite" in kind or "v5lite" in kind or "v5e" in kind:
        return 128
    return 256


def _pick_nm_tile(n, preferred):
    for t in (preferred, 128):
        if t <= n and n % t == 0:
            return t
    return n  # full dim is always a legal block extent


def _pick_k_tile(d, max_k=2048):
    if d <= max_k:
        return d
    for t in (max_k, 1024, 512, 256, 128):
        if d % t == 0:
            return t
    return d  # awkward D: keep whole (correct, just uses more VMEM)


def feature_correlation_passthrough(features):
    """Returns (features, corr) mirroring the PyTorch module.

    features: (B, N, D) float array.
    corr:     (B, N, N) = (features @ features^T) * (0.001 / D), same dtype
              as `features` (accumulated in f32 on the MXU).
    """
    B, N, D = features.shape
    scale = 0.001 / float(D)  # features.shape[2] == D (last dim)

    pref = _mxu_tile_preference()
    TM = _pick_nm_tile(N, pref)
    TN = _pick_nm_tile(N, pref)
    TK = _pick_k_tile(D)

    grid = (B, N // TM, N // TN, D // TK)

    corr = pl.pallas_call(
        functools.partial(_corr_kernel, scale=scale),
        out_shape=jax.ShapeDtypeStruct((B, N, N), features.dtype),
        grid_spec=pltpu.PrefetchScalarGridSpec(
            num_scalar_prefetch=0,
            grid=grid,
            in_specs=[
                # Row tiles of features (indexed by i along N, k along D).
                pl.BlockSpec((pl.Squeezed(), TM, TK),
                             lambda b, i, j, k: (b, i, k)),
                # Column tiles of the SAME features (indexed by j along N).
                pl.BlockSpec((pl.Squeezed(), TN, TK),
                             lambda b, i, j, k: (b, j, k)),
            ],
            out_specs=pl.BlockSpec((pl.Squeezed(), TM, TN),
                                   lambda b, i, j, k: (b, i, j)),
            scratch_shapes=[pltpu.VMEM((TM, TN), jnp.float32)],
        ),
        compiler_params=pltpu.CompilerParams(
            dimension_semantics=("parallel", "parallel", "parallel",
                                 "arbitrary"),
        ),
    )(features, features)

    # Passthrough: module returns its input unchanged; corr is the
    # `export_attention` side output (returned here instead of stored).
    return features, corr


if __name__ == "__main__":
    key = jax.random.PRNGKey(0)
    B, N, D = 2, 8, 32  # batch=2, seq=8, hidden=32
    features = jax.random.normal(key, (B, N, D), dtype=jnp.float32)

    out_features, corr = feature_correlation_passthrough(features)
    out_features = jax.block_until_ready(out_features)
    corr = jax.block_until_ready(corr)

    # Reference check (plain JAX) for the exported correlation.
    corr_ref = jnp.einsum("bnd,bmd->bnm", features, features) * (0.001 / D)
    assert out_features.shape == (B, N, D)
    assert corr.shape == (B, N, N)
    assert jnp.allclose(corr, corr_ref, atol=1e-5, rtol=1e-5)
    assert jnp.array_equal(out_features, features)

    print("KERNEL_OK")
</pallas_src>

<mosaic_0001>
module attributes {stable_mosaic.version = 11 : i64} {
  func.func @_corr_kernel(%arg0: i32, %arg1: i32, %arg2: i32, %arg3: i32, %arg4: memref<1x8x32xf32, #tpu.memory_space<vmem>>, %arg5: memref<1x8x32xf32, #tpu.memory_space<vmem>>, %arg6: memref<1x8x8xf32, #tpu.memory_space<vmem>>, %arg7: memref<8x8xf32, #tpu.memory_space<vmem>>) attributes {dimension_semantics = [#tpu.dimension_semantics<parallel>, #tpu.dimension_semantics<parallel>, #tpu.dimension_semantics<parallel>, #tpu.dimension_semantics<arbitrary>], iteration_bounds = array<i64: 2, 1, 1, 1>, scalar_prefetch = 0 : i64, scratch_operands = 1 : i64, tpu.core_type = #tpu.core_type<tc>, window_params = [{transform_indices = @transform_0, window_bounds = array<i64: 1, 8, 32>}, {transform_indices = @transform_1, window_bounds = array<i64: 1, 8, 32>}, {transform_indices = @transform_2, window_bounds = array<i64: 1, 8, 8>}]} {
    %c0_i32 = arith.constant 0 : i32
    %0 = arith.cmpi eq, %arg3, %c0_i32 : i32
    %1 = arith.extui %0 : i1 to i32
    %c0_i32_0 = arith.constant 0 : i32
    %2 = arith.cmpi ne, %1, %c0_i32_0 : i32
    scf.if %2 {
      %cst_13 = arith.constant 0.000000e+00 : f32
      %16 = vector.broadcast %cst_13 : f32 to vector<8x8xf32>
      %c0_14 = arith.constant 0 : index
      %c0_15 = arith.constant 0 : index
      %17 = vector.load %arg7[%c0_14, %c0_15] : memref<8x8xf32, #tpu.memory_space<vmem>>, vector<8x8xf32>
      tpu.vector_store %arg7[%c0_14, %c0_15], %16 {strides = array<i32>} : memref<8x8xf32, #tpu.memory_space<vmem>>, vector<8x8xf32>,
    } else {
    }
    %c0 = arith.constant 0 : index
    %c0_1 = arith.constant 0 : index
    %c0_2 = arith.constant 0 : index
    %3 = vector.load %arg4[%c0, %c0_1, %c0_2] : memref<1x8x32xf32, #tpu.memory_space<vmem>>, vector<1x8x32xf32>
    %4 = vector.shape_cast %3 : vector<1x8x32xf32> to vector<8x32xf32>
    %cst = arith.constant 3.125000e-05 : f32
    %5 = vector.broadcast %cst : f32 to vector<8x32xf32>
    %6 = arith.mulf %4, %5 : vector<8x32xf32>
    %c0_3 = arith.constant 0 : index
    %c0_4 = arith.constant 0 : index
    %c0_5 = arith.constant 0 : index
    %7 = vector.load %arg5[%c0_3, %c0_4, %c0_5] : memref<1x8x32xf32, #tpu.memory_space<vmem>>, vector<1x8x32xf32>
    %8 = vector.shape_cast %7 : vector<1x8x32xf32> to vector<8x32xf32>
    %c0_6 = arith.constant 0 : index
    %c0_7 = arith.constant 0 : index
    %9 = vector.load %arg7[%c0_6, %c0_7] : memref<8x8xf32, #tpu.memory_space<vmem>>, vector<8x8xf32>
    %cst_8 = arith.constant dense<0.000000e+00> : vector<8x8xf32>
    %10 = tpu.matmul %6, %8, %cst_8 {dimension_numbers = #tpu.dot_dimension_numbers<[1], [1], [0], [0], [0, 0, 1, 0], [], []>} : vector<8x32xf32>, vector<8x32xf32>, vector<8x8xf32> -> vector<8x8xf32>
    %11 = arith.addf %9, %10 : vector<8x8xf32>
    %c0_9 = arith.constant 0 : index
    %c0_10 = arith.constant 0 : index
    %12 = vector.load %arg7[%c0_9, %c0_10] : memref<8x8xf32, #tpu.memory_space<vmem>>, vector<8x8xf32>
    tpu.vector_store %arg7[%c0_9, %c0_10], %11 {strides = array<i32>} : memref<8x8xf32, #tpu.memory_space<vmem>>, vector<8x8xf32>,
    %c0_i32_11 = arith.constant 0 : i32
    %13 = arith.cmpi eq, %arg3, %c0_i32_11 : i32
    %14 = arith.extui %13 : i1 to i32
    %c0_i32_12 = arith.constant 0 : i32
    %15 = arith.cmpi ne, %14, %c0_i32_12 : i32
    scf.if %15 {
      %c0_13 = arith.constant 0 : index
      %c0_14 = arith.constant 0 : index
      %16 = vector.load %arg7[%c0_13, %c0_14] : memref<8x8xf32, #tpu.memory_space<vmem>>, vector<8x8xf32>
      %c0_15 = arith.constant 0 : index
      %c0_16 = arith.constant 0 : index
      %c0_17 = arith.constant 0 : index
      %17 = vector.load %arg6[%c0_15, %c0_16, %c0_17] : memref<1x8x8xf32, #tpu.memory_space<vmem>>, vector<1x8x8xf32>
      %18 = vector.shape_cast %17 : vector<1x8x8xf32> to vector<8x8xf32>
      %19 = vector.shape_cast %16 : vector<8x8xf32> to vector<1x8x8xf32>
      tpu.vector_store %arg6[%c0_15, %c0_16, %c0_17], %19 {strides = array<i32>} : memref<1x8x8xf32, #tpu.memory_space<vmem>>, vector<1x8x8xf32>,
    } else {
    }
    return
  }
  func.func @transform_0(%arg0: i32, %arg1: i32, %arg2: i32, %arg3: i32) -> (i32, i32, i32) {
    %c0_i32 = arith.constant 0 : i32
    return %arg0, %arg1, %arg3 : i32, i32, i32
  }
  func.func @transform_1(%arg0: i32, %arg1: i32, %arg2: i32, %arg3: i32) -> (i32, i32, i32) {
    %c0_i32 = arith.constant 0 : i32
    return %arg0, %arg2, %arg3 : i32, i32, i32
  }
  func.func @transform_2(%arg0: i32, %arg1: i32, %arg2: i32, %arg3: i32) -> (i32, i32, i32) {
    %c0_i32 = arith.constant 0 : i32
    return %arg0, %arg1, %arg2 : i32, i32, i32
  }
}

</mosaic_0001>

<llo_original>
// kernel: tpu_custom_call.1
$region0: #{tpu_custom_call.1}
  #allocation0 [shape = 'u32[]', space=smem, size = 0x4, offset = 0x4, fixed_abs, tag = 'smem constant byte address 0x4 - core index']
  #allocation1 [shape = 'u32[144,128]{1,0:T(1,128)}', space=vmem, size = 0x12000, scoped, tag = 'internal scratch']
  #allocation2 [shape = 'f32[8,8]{1,0:T(8,128)}', space=vmem, size = 0x1000, scoped, tag = 'scratch operand']
  %s0 = inlined_call_operand.hbm [shape: f32[2,8,32], index: 0, kind: input, shape index: {}]
  %s1 = inlined_call_operand.hbm [shape: f32[2,8,32], index: 1, kind: input, shape index: {}]
  %s2 = inlined_call_operand.hbm [shape: f32[2,8,8], index: 2, kind: output, shape index: {}]
  %s3 = sld [smem:[#allocation0]]
  $region57: #{tpu_custom_call.1} parent=0
    _
  %s5 = ssub.s32 1, %s3
  %s6 = scalar_select 0, %s5, %s3
  $region1: #{tpu_custom_call.1} parent=0
    #allocation3 [shape = 'u8[8192]{0}', space=vmem, size = 0x2000, scoped, tag = 'input window, operand 0']
    #allocation4 [shape = 's32[2]{0}', space=sflag, size = 0x8, scoped, tag = 'scoped memory for tpu_custom_call.1']
    #allocation5 [shape = 's32[2]{0}', space=sflag, size = 0x8, scoped, tag = 'scoped memory for tpu_custom_call.1']
    #allocation6 [shape = 'u8[8192]{0}', space=vmem, size = 0x2000, scoped, tag = 'input window, operand 1']
    #allocation7 [shape = 's32[2]{0}', space=sflag, size = 0x8, scoped, tag = 'scoped memory for tpu_custom_call.1']
    #allocation8 [shape = 'u8[8192]{0}', space=vmem, size = 0x2000, scoped, tag = 'output window, operand 0']
    %7 = vsyncpa [#allocation4], 0
    %s8 = scalar_lea.sflag [#allocation4], 1
    %9 = vsyncpa %s8, 0
    %10 = vsyncpa [#allocation7], 0
    %s11 = scalar_lea.sflag [#allocation7], 1
    %12 = vsyncpa %s11, 0
    %13 = vsyncpa [#allocation5], 0
    %s14 = scalar_lea.sflag [#allocation5], 1
    %15 = vsyncpa %s14, 0
    loop: start=0, step=1, limit=4
    $region2: #{tpu_custom_call.1} parent=1 // loop_pre_header
      _
    $region3: #{tpu_custom_call.1} parent=1 // loop_header
      %s17 = sphi 0, %s21
      %p18 = scmp.ge.s32.totalorder %s17, 4
      %s24 = sphi 0, %s50
      %s25 = sphi 0, %s46
      %s26 = sphi 0, %s42
      %s27 = sphi 0, %s38
      %s28 = sphi 0, %s24
      %s29 = sphi 0, %s25
      %s30 = sphi 0, %s26
      %s31 = sphi 0, %s27
      %s32 = sphi 0, %s28
      %s33 = sphi 0, %s29
      %s34 = sphi 0, %s30
      %s35 = sphi 0, %s31
      %s57 = sphi 0, %s59
      %s60 = sphi 0, %s57
      %s61 = sphi 0, %s60
      %s77 = sphi 0, %s61
      %s87 = sphi 0, %s89
      %s90 = sphi 0, %s87
      %s91 = sphi 0, %s90
      %s107 = sphi 0, %s91
      %s117 = sphi 0, %s119
      %s120 = sphi 0, %s117
      %s121 = sphi 0, %s120
      %s137 = sphi 0, %s121
    $region4: #{tpu_custom_call.1} parent=1 // loop_header_branch
      %20 = sbr.rel (%p18) target = $region8
    $region5: #{tpu_custom_call.1} parent=1 // loop_body
      %s22 = ssub.s32 %s17, 1
      %s23 = ssub.s32 %s17, 2
      %s36 = sadd.s32 1, %s27
      %p37 = scmp.ge.s32.totalorder %s36, 1
      %s38 = scalar_select %p37, 0, %s36
      %s39 = sadd.s32 1, %s26
      %s40 = scalar_select %p37, %s39, %s26
      %p41 = scmp.ge.s32.totalorder %s40, 1
      %s42 = scalar_select %p41, 0, %s40
      %s43 = sadd.s32 1, %s25
      %s44 = scalar_select %p41, %s43, %s25
      %p45 = scmp.ge.s32.totalorder %s44, 1
      %s46 = scalar_select %p45, 0, %s44
      %s47 = sadd.s32 1, %s24
      %s48 = scalar_select %p45, %s47, %s24
      %p49 = scmp.ge.s32.totalorder %s48, 2
      %s50 = scalar_select %p49, 0, %s48
      %s51 = ssub.s32 %s24, %s50
      %s52 = ssub.s32 %s25, %s46
      %s53 = sor.u32 %s51, %s52
      %s54 = ssub.s32 %s27, %s38
      %s55 = sor.u32 %s53, %s54
      %p56 = scmp.eq.s32.totalorder %s55, 0
      %s58 = sadd.s32 %s57, 1
      %s59 = scalar_select %p56, %s57, %s58
      %p62 = pneg %p56
      %p63 = scmp.eq.s32.totalorder %s17, 1
      %p64 = por %p62, %p63
      %p65 = scmp.ne.s32.totalorder %s57, %s60
      %p66 = scmp.eq.s32.totalorder %s17, 0
      %p67 = por %p65, %p66
      %p68 = scmp.ne.s32.totalorder %s57, %s60
      %p69 = scmp.eq.s32.totalorder %s22, 1
      %p70 = por %p68, %p69
      %p71 = scmp.ne.s32.totalorder %s60, %s61
      %p72 = scmp.eq.s32.totalorder %s22, 0
      %p73 = por %p71, %p72
      %p74 = scmp.ne.s32.totalorder %s60, %s61
      %p75 = scmp.eq.s32.totalorder %s23, 1
      %p76 = por %p74, %p75
      %p78 = scmp.ne.s32.totalorder %s61, %s77
      %p79 = scmp.eq.s32.totalorder %s23, 0
      %p80 = por %p78, %p79
      %s81 = ssub.s32 %s24, %s50
      %s82 = ssub.s32 %s26, %s42
      %s83 = sor.u32 %s81, %s82
      %s84 = ssub.s32 %s27, %s38
      %s85 = sor.u32 %s83, %s84
      %p86 = scmp.eq.s32.totalorder %s85, 0
      %s88 = sadd.s32 %s87, 1
      %s89 = scalar_select %p86, %s87, %s88
      %p92 = pneg %p86
      %p93 = scmp.eq.s32.totalorder %s17, 1
      %p94 = por %p92, %p93
      %p95 = scmp.ne.s32.totalorder %s87, %s90
      %p96 = scmp.eq.s32.totalorder %s17, 0
      %p97 = por %p95, %p96
      %p98 = scmp.ne.s32.totalorder %s87, %s90
      %p99 = scmp.eq.s32.totalorder %s22, 1
      %p100 = por %p98, %p99
      %p101 = scmp.ne.s32.totalorder %s90, %s91
      %p102 = scmp.eq.s32.totalorder %s22, 0
      %p103 = por %p101, %p102
      %p104 = scmp.ne.s32.totalorder %s90, %s91
      %p105 = scmp.eq.s32.totalorder %s23, 1
      %p106 = por %p104, %p105
      %p108 = scmp.ne.s32.totalorder %s91, %s107
      %p109 = scmp.eq.s32.totalorder %s23, 0
      %p110 = por %p108, %p109
      %s111 = ssub.s32 %s24, %s50
      %s112 = ssub.s32 %s25, %s46
      %s113 = sor.u32 %s111, %s112
      %s114 = ssub.s32 %s26, %s42
      %s115 = sor.u32 %s113, %s114
      %p116 = scmp.eq.s32.totalorder %s115, 0
      %s118 = sadd.s32 %s117, 1
      %s119 = scalar_select %p116, %s117, %s118
      %p122 = pneg %p116
      %p123 = scmp.eq.s32.totalorder %s17, 1
      %p124 = por %p122, %p123
      %p125 = scmp.ne.s32.totalorder %s117, %s120
      %p126 = scmp.eq.s32.totalorder %s17, 0
      %p127 = por %p125, %p126
      %p128 = scmp.ne.s32.totalorder %s117, %s120
      %p129 = scmp.eq.s32.totalorder %s22, 1
      %p130 = por %p128, %p129
      %p131 = scmp.ne.s32.totalorder %s120, %s121
      %p132 = scmp.eq.s32.totalorder %s22, 0
      %p133 = por %p131, %p132
      %p134 = scmp.ne.s32.totalorder %s120, %s121
      %p135 = scmp.eq.s32.totalorder %s23, 1
      %p136 = por %p134, %p135
      %p138 = scmp.ne.s32.totalorder %s121, %s137
      %p139 = scmp.eq.s32.totalorder %s23, 0
      %p140 = por %p138, %p139
      %p141 = scmp.le.s32.totalorder 1, %s17
      %p142 = scmp.lt.s32.totalorder %s17, 3
      %p143 = pnand %p141, %p142
      %p144 = pneg %p143
      // Predicated region
      $region9: #{tpu_custom_call.1} parent=5 // pred_check
        _
      $region10: #{tpu_custom_call.1} parent=5 // pred_check_branch
        %146 = sbr.rel (%p143) target = $region12
      $region11: #{tpu_custom_call.1} parent=5 // pred_region
        %s147 = ssub.s32 %s17, 1
      $region12: #{tpu_custom_call.1} parent=5 // pred_fallthru
        _
      %p148 = scmp.lt.s32.totalorder %s17, 2
      // Predicated region
      $region13: #{tpu_custom_call.1} parent=5 // pred_check
        %p149 = pneg %p148
      $region14: #{tpu_custom_call.1} parent=5 // pred_check_branch
        %151 = sbr.rel (%p149) target = $region16
      $region15: #{tpu_custom_call.1} parent=5 // pred_region
        // Predicated region
        $region17: #{tpu_custom_call.1} parent=15 // pred_check
          %p152 = pneg %p67
        $region18: #{tpu_custom_call.1} parent=15 // pred_check_branch
          %154 = sbr.rel (%p152) target = $region20
        $region19: #{tpu_custom_call.1} parent=15 // pred_region
          %s155 = sand.u32 %s57, 1
          %s156 = scalar_lea.sflag [#allocation4], %s155
          %s157 = sand.u32 %s57, 1
          %s158 = smul.addr %s157, 8
          %s159 = scalar_lea.vmem [#allocation3], %s158
          %s161 = ssub.s32 128, 128
          %162 = vsyncadd %s156, %s161
          %s163 = sadd.s32 %s27, %s25
          %s164 = sadd.s32 %s163, %s24
          %s165 = smul.addr %s164, 128
          %s166 = scalar_lea.hbm %s0, %s165
          %s168 = sshll.u32 %s159, 4
          %s169 = int_to_ptr.vmem [resolvable:$true] %s168
          %171 = dma.hbm_to_vmem [thread:$0]  %s166, 128, %s169, %s156
        $region20: #{tpu_custom_call.1} parent=15 // pred_fallthru
          _
        // Predicated region
        $region21: #{tpu_custom_call.1} parent=15 // pred_check
          %p172 = pneg %p97
        $region22: #{tpu_custom_call.1} parent=15 // pred_check_branch
          %174 = sbr.rel (%p172) target = $region24
        $region23: #{tpu_custom_call.1} parent=15 // pred_region
          %s175 = sand.u32 %s87, 1
          %s176 = scalar_lea.sflag [#allocation7], %s175
          %s177 = sand.u32 %s87, 1
          %s178 = smul.addr %s177, 8
          %s179 = scalar_lea.vmem [#allocation6], %s178
          %s181 = ssub.s32 128, 128
          %182 = vsyncadd %s176, %s181
          %s183 = sadd.s32 %s27, %s26
          %s184 = sadd.s32 %s183, %s24
          %s185 = smul.addr %s184, 128
          %s186 = scalar_lea.hbm %s1, %s185
          %s188 = sshll.u32 %s179, 4
          %s189 = int_to_ptr.vmem [resolvable:$true] %s188
          %191 = dma.hbm_to_vmem [thread:$0]  %s186, 128, %s189, %s176
        $region24: #{tpu_custom_call.1} parent=15 // pred_fallthru
          _
      $region16: #{tpu_custom_call.1} parent=5 // pred_fallthru
        _
      %p192 = scmp.le.s32.totalorder 1, %s17
      %p193 = scmp.lt.s32.totalorder %s17, 3
      %p194 = pnand %p192, %p193
      %p195 = pneg %p194
      // Predicated region
      $region25: #{tpu_custom_call.1} parent=5 // pred_check
        _
      $region26: #{tpu_custom_call.1} parent=5 // pred_check_branch
        %197 = sbr.rel (%p194) target = $region28
      $region27: #{tpu_custom_call.1} parent=5 // pred_region
        %s198 = ssub.s32 %s17, 1
        %s199 = sand.u32 %s60, 1
        %s200 = scalar_lea.sflag [#allocation4], %s199
        %s201 = sand.u32 %s60, 1
        %s202 = smul.addr %s201, 8
        %s203 = scalar_lea.vmem [#allocation3], %s202
        // Predicated region
        $region29: #{tpu_custom_call.1} parent=27 // pred_check
          %p204 = pneg %p73
        $region30: #{tpu_custom_call.1} parent=27 // pred_check_branch
          %206 = sbr.rel (%p204) target = $region32
        $region31: #{tpu_custom_call.1} parent=27 // pred_region
          %207 = dma.done %s200, 128
        $region32: #{tpu_custom_call.1} parent=27 // pred_fallthru
          _
        %s208 = sand.u32 %s90, 1
        %s209 = scalar_lea.sflag [#allocation7], %s208
        %s210 = sand.u32 %s90, 1
        %s211 = smul.addr %s210, 8
        %s212 = scalar_lea.vmem [#allocation6], %s211
        // Predicated region
        $region33: #{tpu_custom_call.1} parent=27 // pred_check
          %p213 = pneg %p103
        $region34: #{tpu_custom_call.1} parent=27 // pred_check_branch
          %215 = sbr.rel (%p213) target = $region36
        $region35: #{tpu_custom_call.1} parent=27 // pred_region
          %216 = dma.done %s209, 128
        $region36: #{tpu_custom_call.1} parent=27 // pred_fallthru
          _
        %s217 = sand.u32 %s60, 1
        %s218 = scalar_lea.sflag [#allocation4], %s217
        %s219 = sand.u32 %s60, 1
        %s220 = smul.addr %s219, 8
        %s221 = scalar_lea.vmem [#allocation3], %s220
        %p222 = pneg %p73
        %p223 = pneg %p70
        %s224 = sand.u32 %s90, 1
        %s225 = scalar_lea.sflag [#allocation7], %s224
        %s226 = sand.u32 %s90, 1
        %s227 = smul.addr %s226, 8
        %s228 = scalar_lea.vmem [#allocation6], %s227
        %p229 = pneg %p103
        %p230 = pneg %p100
        %p231 = pneg %p133
        %p232 = pneg %p130
        %s233 = sand.u32 %s120, 1
        %s234 = scalar_lea.sflag [#allocation5], %s233
        %s235 = sand.u32 %s120, 1
        %s236 = smul.addr %s235, 8
        %s237 = scalar_lea.vmem [#allocation8], %s236
        %p238 = scmp.eq.s32.totalorder %s31, 0
        // Predicated region
        $region37: #{tpu_custom_call.1} parent=27 // pred_check
          %p239 = pneg %p238
        $region38: #{tpu_custom_call.1} parent=27 // pred_check_branch
          %241 = sbr.rel (%p239) target = $region40
        $region39: #{tpu_custom_call.1} parent=27 // pred_region
          %vm242 = vcmask 64512
          %243 = vst.msk [vmem:[#allocation2] sm:$0xff] %vm242, 0.0
        $region40: #{tpu_custom_call.1} parent=27 // pred_fallthru
          _
        %v244 = vld [vmem:[%s203] sm:$0xff]
        %v245 = vmul.f32 %v244, 3.125e-05
        %v246 = vld [vmem:[%s212] sm:$0xff]
        %v247 = vld [vmem:[#allocation2] sm:$0xff]
        %vm248 = vcmask 261120
        %v250 = vsel %vm248, %v245, 0
        %v253 = vsel %vm248, %v246, 0
        %255 = vmatprep.subr.mxu0 0.0
        %256 = vmatpush1.xpose.msra.mxu0 %v253
        %257 = vmatprep.subr.mxu0 0.0
        %258 = vmatpush1.xpose.msra.mxu0 0.0
        %259 = vmatprep.subr.mxu0 0.0
        %260 = vmatpush1.xpose.msra.mxu0 0.0
        %261 = vmatprep.subr.mxu0 0.0
        %262 = vmatpush1.xpose.msra.mxu0 0.0
        %263 = vmatprep.subr.mxu0 0.0
        %264 = vmatpush1.xpose.msra.mxu0 0.0
        %265 = vmatprep.subr.mxu0 0.0
        %266 = vmatpush1.xpose.msra.mxu0 0.0
        %267 = vmatprep.subr.mxu0 0.0
        %268 = vmatpush1.xpose.msra.mxu0 0.0
        %269 = vmatprep.subr.mxu0 0.0
        %270 = vmatpush1.xpose.msra.mxu0 0.0
        %271 = vmatprep.subr.mxu0 0.0
        %272 = vmatpush1.xpose.msra.mxu0 0.0
        %273 = vmatprep.subr.mxu0 0.0
        %274 = vmatpush1.xpose.msra.mxu0 0.0
        %275 = vmatprep.subr.mxu0 0.0
        %276 = vmatpush1.xpose.msra.mxu0 0.0
        %277 = vmatprep.subr.mxu0 0.0
        %278 = vmatpush1.xpose.msra.mxu0 0.0
        %279 = vmatprep.subr.mxu0 0.0
        %280 = vmatpush1.xpose.msra.mxu0 0.0
        %281 = vmatprep.subr.mxu0 0.0
        %282 = vmatpush1.xpose.msra.mxu0 0.0
        %283 = vmatprep.subr.mxu0 0.0
        %284 = vmatpush1.xpose.msra.mxu0 0.0
        %285 = vmatprep.subr.mxu0 0.0
        %286 = vmatpush1.xpose.msra.mxu0 0.0
        %287 = vmatprep.subr.mxu0 0.0
        %288 = vmatpush1.xpose.msra.mxu0 0.0
        %289 = vmatprep.subr.mxu0 0.0
        %290 = vmatpush1.xpose.msra.mxu0 0.0
        %291 = vmatprep.subr.mxu0 0.0
        %292 = vmatpush1.xpose.msra.mxu0 0.0
        %293 = vmatprep.subr.mxu0 0.0
        %294 = vmatpush1.xpose.msra.mxu0 0.0
        %295 = vmatprep.subr.mxu0 0.0
        %296 = vmatpush1.xpose.msra.mxu0 0.0
        %297 = vmatprep.subr.mxu0 0.0
        %298 = vmatpush1.xpose.msra.mxu0 0.0
        %299 = vmatprep.subr.mxu0 0.0
        %300 = vmatpush1.xpose.msra.mxu0 0.0
        %301 = vmatprep.subr.mxu0 0.0
        %302 = vmatpush1.xpose.msra.mxu0 0.0
        %303 = vmatprep.subr.mxu0 0.0
        %304 = vmatpush1.xpose.msra.mxu0 0.0
        %305 = vmatprep.subr.mxu0 0.0
        %306 = vmatpush1.xpose.msra.mxu0 0.0
        %307 = vmatprep.subr.mxu0 0.0
        %308 = vmatpush1.xpose.msra.mxu0 0.0
        %309 = vmatprep.subr.mxu0 0.0
        %310 = vmatpush1.xpose.msra.mxu0 0.0
        %311 = vmatprep.subr.mxu0 0.0
        %312 = vmatpush1.xpose.msra.mxu0 0.0
        %313 = vmatprep.subr.mxu0 0.0
        %314 = vmatpush1.xpose.msra.mxu0 0.0
        %315 = vmatprep.subr.mxu0 0.0
        %316 = vmatpush1.xpose.msra.mxu0 0.0
        %317 = vmatprep.subr.mxu0 0.0
        %318 = vmatpush1.xpose.msra.mxu0 0.0
        %319 = vmatprep.mubr.f32.mxu0 0.0
        %320 = vmatmul.mubr.f32.gmra.mrb[0].mxu0 %v250
        %v321 = vpop.f32.mrb[0].mxu0
        %v322 = vadd.f32 0.0, %v321
        %v323 = vpop.f32.mrb[0].mxu0
        %324 = vdwg.mxu0
        %v325 = vadd.f32 %v247, %v322
        %vm326 = vcmask 64512
        %327 = vst.msk [vmem:[#allocation2] sm:$0xff] %vm326, %v325
        // Predicated region
        $region41: #{tpu_custom_call.1} parent=27 // pred_check
          %p328 = pneg %p238
        $region42: #{tpu_custom_call.1} parent=27 // pred_check_branch
          %330 = sbr.rel (%p328) target = $region44
        $region43: #{tpu_custom_call.1} parent=27 // pred_region
          %v331 = vld [vmem:[#allocation2] sm:$0xff]
          %332 = vst.msk [vmem:[%s237] sm:$0xff] %vm326, %v331
        $region44: #{tpu_custom_call.1} parent=27 // pred_fallthru
          _
        %s333 = sand.u32 %s120, 1
        %s334 = scalar_lea.sflag [#allocation5], %s333
        %s335 = sand.u32 %s120, 1
        %s336 = smul.addr %s335, 8
        %s337 = scalar_lea.vmem [#allocation8], %s336
        // Predicated region
        $region45: #{tpu_custom_call.1} parent=27 // pred_check
          %p338 = pneg %p130
        $region46: #{tpu_custom_call.1} parent=27 // pred_check_branch
          %340 = sbr.rel (%p338) target = $region48
        $region47: #{tpu_custom_call.1} parent=27 // pred_region
          %s342 = ssub.s32 128, 128
          %343 = vsyncadd %s334, %s342
          %s344 = sadd.s32 %s30, %s29
          %s345 = sadd.s32 %s344, %s28
          %s346 = smul.addr %s345, 128
          %s347 = scalar_lea.hbm %s2, %s346
          %s349 = sshll.u32 %s337, 4
          %s350 = int_to_ptr.vmem [resolvable:$true] %s349
          %352 = dma.vmem_to_hbm [thread:$0]  %s350, 128, %s347, %s334
        $region48: #{tpu_custom_call.1} parent=27 // pred_fallthru
          _
      $region28: #{tpu_custom_call.1} parent=5 // pred_fallthru
        _
      %p353 = scmp.le.s32.totalorder 2, %s17
      // Predicated region
      $region49: #{tpu_custom_call.1} parent=5 // pred_check
        %p354 = pneg %p353
      $region50: #{tpu_custom_call.1} parent=5 // pred_check_branch
        %356 = sbr.rel (%p354) target = $region52
      $region51: #{tpu_custom_call.1} parent=5 // pred_region
        %s357 = ssub.s32 %s17, 2
        // Predicated region
        $region53: #{tpu_custom_call.1} parent=51 // pred_check
          %p358 = pneg %p136
        $region54: #{tpu_custom_call.1} parent=51 // pred_check_branch
          %360 = sbr.rel (%p358) target = $region56
        $region55: #{tpu_custom_call.1} parent=51 // pred_region
          %s361 = sand.u32 %s121, 1
          %s362 = scalar_lea.sflag [#allocation5], %s361
          %s363 = sand.u32 %s121, 1
          %s364 = smul.addr %s363, 8
          %s365 = scalar_lea.vmem [#allocation8], %s364
          %366 = dma.done %s362, 128
        $region56: #{tpu_custom_call.1} parent=51 // pred_fallthru
          _
      $region52: #{tpu_custom_call.1} parent=5 // pred_fallthru
        _
    $region6: #{tpu_custom_call.1} parent=1 // loop_footer
      %s21 = sadd.s32 1, %s17
    $region7: #{tpu_custom_call.1} parent=1 // loop_footer_branch
      %16 = sbr.rel target = $region3
    $region8: #{tpu_custom_call.1} parent=1 // loop_exit
      _
    %367 = vsyncpa [#allocation4], 1
    %s368 = scalar_lea.sflag [#allocation4], 1
    %369 = vsyncpa %s368, 1
    %370 = vsyncpa [#allocation7], 1
    %s371 = scalar_lea.sflag [#allocation7], 1
    %372 = vsyncpa %s371, 1
    %373 = vsyncpa [#allocation5], 1
    %s374 = scalar_lea.sflag [#allocation5], 1
    %375 = vsyncpa %s374, 1

</llo_original>
